<compile_context>
chip_gen: v5e
topology: v5e:2x2
jax: 0.10.0
libtpu: 0.0.40
codegen_flags: <defaults>
</compile_context>

<pallas_src>
import functools

import jax
import jax.numpy as jnp
import numpy as np
from jax import lax
from jax.experimental import pallas as pl
from jax.experimental.pallas import tpu as pltpu


def _round_up(v, m):
    return ((v + m - 1) // m) * m


def _tpu_generation():
    try:
        kind = jax.devices()[0].device_kind.lower()
    except Exception:
        return "unknown"
    if "v5 lite" in kind or "v5e" in kind or "v5lite" in kind:
        return "v5e"
    if "v6" in kind:
        return "v6e"
    if "7x" in kind or "v7" in kind:
        return "v7x"
    return "unknown"


def _vmem_capacity_bytes(gen):
    try:
        cap = int(pltpu.get_tpu_info().vmem_capacity_bytes)
        if cap > 0:
            return cap
    except Exception:
        pass
    return {"v5e": 128 << 20, "v6e": 128 << 20, "v7x": 64 << 20}.get(gen, 64 << 20)


def _conv_bn_relu_kernel(x_ref, w_ref, s_ref, t_ref, o_ref):
    """One grid step: one aligned MXU matmul + fused BN/ReLU epilogue.

    x_ref : (Rt, KC_p)                       bf16  im2col activation rows
    w_ref : (n_ct, KC_p, CT) or (KC_p, CT)   bf16  weights (resident or per-tile)
    s_ref : (n_ct, 1, CT)    or (1, CT)      f32   folded BN scale
    t_ref : (n_ct, 1, CT)    or (1, CT)      f32   folded BN shift (conv bias folded)
    o_ref : (Rt, CT)                         bf16  output rows
    """
    if len(w_ref.shape) == 3:
        # Resident weights: pick this step's output-channel tile by a dynamic index
        # on the leading (untiled) axis -- a cheap base-address offset.
        c = pl.program_id(1)
        w, s, t = w_ref[c], s_ref[c], t_ref[c]
    else:
        w, s, t = w_ref[...], s_ref[...], t_ref[...]
    acc = jnp.dot(x_ref[...], w, preferred_element_type=jnp.float32)
    o_ref[...] = jnp.maximum(acc * s + t, 0.0).astype(o_ref.dtype)   # BN + ReLU; Dropout=id


@functools.partial(jax.jit, static_argnames=("kernel_size",))
def conv_bn_relu_pallas(x_ncl, params, *, kernel_size, eps=1e-5):
    """x_ncl: (B, C_in, L) float32, same convention as the PyTorch module."""
    B, Cin, L = x_ncl.shape
    K = kernel_size
    if K % 2 != 1:
        # padding = K//2 is only "same"-length for odd kernels (PyTorch returns L+1).
        raise ValueError("kernel_size must be odd for 'same'-length Conv1d semantics")
    pad = K // 2
    Cout = params["conv_w"].shape[0]

    gen = _tpu_generation()
    vmem_cap = _vmem_capacity_bytes(gen)
    if gen in ("v5e", "v6e"):                 # 128 MiB VMEM -> big blocks
        block_budget = min(vmem_cap // 2, 56 << 20)
    else:                                     # v7x (64 MiB / TC) or unknown -> conservative
        block_budget = min(max(vmem_cap // 2 - (8 << 20), 16 << 20), 24 << 20)

    # ---- lane-dense padding ----------------------------------------------------------
    KC = K * Cin
    KC_p = _round_up(KC, 128)                                 # contraction axis
    lane_mult = 128 if (gen == "v5e" or Cout <= 128) else 256  # MXU-width aware
    Cout_p = _round_up(Cout, lane_mult)
    CT = min(Cout_p, lane_mult)                               # output-channel tile
    n_ct = Cout_p // CT

    # ---- resident weights when they fit the budget -----------------------------------
    w_full_bytes = KC_p * Cout_p * 2
    resident = w_full_bytes <= max(block_budget // 3, 2 << 20)
    w_buf_bytes = w_full_bytes if resident else KC_p * CT * 2
    st_bytes = 2 * (Cout_p if resident else CT) * 4

    # ---- row tile: biggest candidate under the per-step VMEM budget -------------------
    R = B * L

    def est(rt):
        x_blk = rt * KC_p * 2            # bf16 im2col rows
        o_blk = rt * CT * 2              # bf16 output rows
        acc = rt * CT * 4 * 2            # f32 matmul result + epilogue temporaries
        return 2 * x_blk + 2 * o_blk + 2 * (w_buf_bytes + st_bytes) + acc

    ru = _round_up(R, 16)
    cands = [4096, 2048, 1024, 512, 256, 128, 64, 32, 16]
    if ru < cands[0]:
        cands = sorted(set(cands + [ru]), reverse=True)
    Rt = 16
    for cand in cands:
        if cand <= max(ru, 16) and est(cand) <= block_budget:
            Rt = cand
            break
    R_p = _round_up(R, Rt)
    n_rt = R_p // Rt

    # ---- activations: cast bf16 first, NCL -> (B,L,Cin) -> im2col (B*L, K*Cin) -------
    x_blc = jnp.transpose(x_ncl.astype(jnp.bfloat16), (0, 2, 1))      # (B, L, Cin)
    x_halo = jnp.pad(x_blc, ((0, 0), (pad, pad), (0, 0)))             # (B, L+2p, Cin)
    cols = jnp.concatenate([x_halo[:, k:k + L, :] for k in range(K)], axis=-1)
    x2d = cols.reshape(R, KC)
    x2d = jnp.pad(x2d, ((0, R_p - R), (0, KC_p - KC)))                # (R_p, KC_p)

    # ---- weights: PyTorch (Cout, Cin, K) -> (K*Cin, Cout) -> pad -> bf16 --------------
    w2 = jnp.transpose(params["conv_w"], (2, 1, 0)).reshape(KC, Cout)
    w2 = jnp.pad(w2, ((0, KC_p - KC), (0, Cout_p - Cout))).astype(jnp.bfloat16)

    # ---- fold conv bias + BatchNorm(eval) into per-channel scale/shift (f32) ----------
    scale = params["bn_gamma"] / jnp.sqrt(params["bn_var"] + eps)
    shift = params["bn_beta"] + (params["conv_b"] - params["bn_mean"]) * scale
    scale_p = jnp.pad(scale, (0, Cout_p - Cout))[None, :].astype(jnp.float32)  # (1, Cout_p)
    shift_p = jnp.pad(shift, (0, Cout_p - Cout))[None, :].astype(jnp.float32)

    # ---- BlockSpecs / grid -------------------------------------------------------------
    if resident:
        # One constant block, fetched once; kernel slices the CT tile per step.
        w_arg = w2.reshape(KC_p, n_ct, CT).transpose(1, 0, 2)          # (n_ct, KC_p, CT)
        s_arg = scale_p.reshape(1, n_ct, CT).transpose(1, 0, 2)        # (n_ct, 1, CT)
        t_arg = shift_p.reshape(1, n_ct, CT).transpose(1, 0, 2)
        w_spec = pl.BlockSpec((n_ct, KC_p, CT), lambda r, c: (0, 0, 0))
        s_spec = pl.BlockSpec((n_ct, 1, CT), lambda r, c: (0, 0, 0))
        t_spec = pl.BlockSpec((n_ct, 1, CT), lambda r, c: (0, 0, 0))
    else:
        w_arg, s_arg, t_arg = w2, scale_p, shift_p
        w_spec = pl.BlockSpec((KC_p, CT), lambda r, c: (0, c))
        s_spec = pl.BlockSpec((1, CT), lambda r, c: (0, c))
        t_spec = pl.BlockSpec((1, CT), lambda r, c: (0, c))

    in_specs = [
        pl.BlockSpec((Rt, KC_p), lambda r, c: (r, 0)),   # im2col rows (revisited over c)
        w_spec, s_spec, t_spec,
    ]
    out_spec = pl.BlockSpec((Rt, CT), lambda r, c: (r, c))

    flops = 2 * R_p * KC_p * Cout_p
    bytes_accessed = (R_p * KC_p * 2 + KC_p * Cout_p * 2
                      + R_p * Cout_p * 2 + 2 * Cout_p * 4)
    cost = pl.CostEstimate(flops=int(flops), transcendentals=0,
                           bytes_accessed=int(bytes_accessed))
    vmem_limit = int(min(vmem_cap - (4 << 20), max(est(Rt) + (8 << 20), 32 << 20)))

    out2d = pl.pallas_call(
        _conv_bn_relu_kernel,
        out_shape=jax.ShapeDtypeStruct((R_p, Cout_p), jnp.bfloat16),
        grid_spec=pltpu.PrefetchScalarGridSpec(
            num_scalar_prefetch=0,
            grid=(n_rt, n_ct),
            in_specs=in_specs,
            out_specs=out_spec,
        ),
        compiler_params=pltpu.CompilerParams(
            # Row (batch*length) axis is the parallel one: on v7x the two TensorCores
            # split disjoint halves of the activation stream.
            dimension_semantics=("parallel", "arbitrary"),
            vmem_limit_bytes=vmem_limit),
        cost_estimate=cost,
    )(x2d, w_arg, s_arg, t_arg)

    out = out2d[:R, :Cout].reshape(B, L, Cout).astype(jnp.float32)    # drop padding
    return jnp.transpose(out, (0, 2, 1))                              # back to (B, Cout, L)


# ---------------- pure-JAX reference (for self-check) ----------------
def conv_bn_relu_ref(x, p, *, kernel_size, eps=1e-5):
    pad = kernel_size // 2
    y = lax.conv_general_dilated(x, p["conv_w"], window_strides=(1,),
                                 padding=[(pad, pad)],
                                 dimension_numbers=("NCH", "OIH", "NCH"))
    y = y + p["conv_b"][None, :, None]
    y = (y - p["bn_mean"][None, :, None]) / jnp.sqrt(p["bn_var"][None, :, None] + eps)
    y = y * p["bn_gamma"][None, :, None] + p["bn_beta"][None, :, None]
    return jnp.maximum(y, 0.0)        # Dropout = identity in eval mode


def make_params(key, d_in, d_out, kernel_size):
    ks = jax.random.split(key, 6)
    u = lambda k, shape, lo, hi: jax.random.uniform(k, shape, jnp.float32, lo, hi)
    return {
        "conv_w": u(ks[0], (d_out, d_in, kernel_size), -0.1, 0.1),
        "conv_b": u(ks[1], (d_out,), -0.1, 0.1),
        "bn_gamma": u(ks[2], (d_out,), 0.8, 1.2),
        "bn_beta": u(ks[3], (d_out,), -0.1, 0.1),
        "bn_mean": u(ks[4], (d_out,), -0.1, 0.1),
        "bn_var": u(ks[5], (d_out,), 0.5, 1.5),
    }


if __name__ == "__main__":
    # TODO(synk): Dropout (train-mode RNG mask) and BatchNorm training-mode batch
    # statistics are not implemented; this is the inference forward pass.
    B, d_in, d_out, L, K = 2, 16, 32, 16, 3

    key = jax.random.PRNGKey(0)
    kx, kp = jax.random.split(key)
    x = jax.random.normal(kx, (B, d_in, L), jnp.float32)
    params = make_params(kp, d_in, d_out, K)

    out = conv_bn_relu_pallas(x, params, kernel_size=K)
    jax.block_until_ready(out)

    ref = conv_bn_relu_ref(x, params, kernel_size=K)
    np.testing.assert_allclose(np.asarray(out), np.asarray(ref),
                               rtol=3e-2, atol=3e-2)
    print("KERNEL_OK")
</pallas_src>

<mosaic_0001>
module attributes {stable_mosaic.version = 11 : i64} {
  func.func @_conv_bn_relu_kernel(%arg0: i32, %arg1: i32, %arg2: memref<32x128xbf16, #tpu.memory_space<vmem>>, %arg3: memref<1x128x128xbf16, #tpu.memory_space<vmem>>, %arg4: memref<1x1x128xf32, #tpu.memory_space<vmem>>, %arg5: memref<1x1x128xf32, #tpu.memory_space<vmem>>, %arg6: memref<32x128xbf16, #tpu.memory_space<vmem>>) attributes {dimension_semantics = [#tpu.dimension_semantics<parallel>, #tpu.dimension_semantics<arbitrary>], iteration_bounds = array<i64: 1, 1>, scalar_prefetch = 0 : i64, scratch_operands = 0 : i64, tpu.core_type = #tpu.core_type<tc>, window_params = [{transform_indices = @transform_0, window_bounds = array<i64: 32, 128>}, {pipeline_mode = #tpu.pipeline_mode<synchronous>, transform_indices = @transform_1, window_bounds = array<i64: 1, 128, 128>}, {pipeline_mode = #tpu.pipeline_mode<synchronous>, transform_indices = @transform_2, window_bounds = array<i64: 1, 1, 128>}, {pipeline_mode = #tpu.pipeline_mode<synchronous>, transform_indices = @transform_3, window_bounds = array<i64: 1, 1, 128>}, {transform_indices = @transform_4, window_bounds = array<i64: 32, 128>}]} {
    %0 = arith.index_cast %arg1 : i32 to index
    %c0 = arith.constant 0 : index
    %c0_0 = arith.constant 0 : index
    %1 = vector.load %arg3[%0, %c0, %c0_0] : memref<1x128x128xbf16, #tpu.memory_space<vmem>>, vector<1x128x128xbf16>
    %2 = vector.shape_cast %1 : vector<1x128x128xbf16> to vector<128x128xbf16>
    %3 = arith.index_cast %arg1 : i32 to index
    %c0_1 = arith.constant 0 : index
    %c0_2 = arith.constant 0 : index
    %4 = vector.load %arg4[%3, %c0_1, %c0_2] : memref<1x1x128xf32, #tpu.memory_space<vmem>>, vector<1x1x128xf32>
    %5 = vector.shape_cast %4 : vector<1x1x128xf32> to vector<1x128xf32>
    %6 = arith.index_cast %arg1 : i32 to index
    %c0_3 = arith.constant 0 : index
    %c0_4 = arith.constant 0 : index
    %7 = vector.load %arg5[%6, %c0_3, %c0_4] : memref<1x1x128xf32, #tpu.memory_space<vmem>>, vector<1x1x128xf32>
    %8 = vector.shape_cast %7 : vector<1x1x128xf32> to vector<1x128xf32>
    %c0_5 = arith.constant 0 : index
    %c0_6 = arith.constant 0 : index
    %9 = vector.load %arg2[%c0_5, %c0_6] : memref<32x128xbf16, #tpu.memory_space<vmem>>, vector<32x128xbf16>
    %cst = arith.constant dense<0.000000e+00> : vector<32x128xf32>
    %10 = tpu.matmul %9, %2, %cst {dimension_numbers = #tpu.dot_dimension_numbers<[1], [0], [0], [1], [0, 0, 1, 1], [], []>} : vector<32x128xbf16>, vector<128x128xbf16>, vector<32x128xf32> -> vector<32x128xf32>
    %11 = vector.broadcast %5 : vector<1x128xf32> to vector<32x128xf32>
    %12 = arith.mulf %10, %11 : vector<32x128xf32>
    %13 = vector.broadcast %8 : vector<1x128xf32> to vector<32x128xf32>
    %14 = arith.addf %12, %13 : vector<32x128xf32>
    %cst_7 = arith.constant 0.000000e+00 : f32
    %15 = vector.broadcast %cst_7 : f32 to vector<32x128xf32>
    %16 = arith.maximumf %14, %15 : vector<32x128xf32>
    %17 = arith.truncf %16 : vector<32x128xf32> to vector<32x128xbf16>
    %c0_8 = arith.constant 0 : index
    %c0_9 = arith.constant 0 : index
    %18 = vector.load %arg6[%c0_8, %c0_9] : memref<32x128xbf16, #tpu.memory_space<vmem>>, vector<32x128xbf16>
    tpu.vector_store %arg6[%c0_8, %c0_9], %17 {strides = array<i32>} : memref<32x128xbf16, #tpu.memory_space<vmem>>, vector<32x128xbf16>,
    return
  }
  func.func @transform_0(%arg0: i32, %arg1: i32) -> (i32, i32) {
    %c0_i32 = arith.constant 0 : i32
    %c0_i32_0 = arith.constant 0 : i32
    return %arg0, %c0_i32 : i32, i32
  }
  func.func @transform_1(%arg0: i32, %arg1: i32) -> (i32, i32, i32) {
    %c0_i32 = arith.constant 0 : i32
    %c0_i32_0 = arith.constant 0 : i32
    %c0_i32_1 = arith.constant 0 : i32
    %c0_i32_2 = arith.constant 0 : i32
    return %c0_i32, %c0_i32_0, %c0_i32_1 : i32, i32, i32
  }
  func.func @transform_2(%arg0: i32, %arg1: i32) -> (i32, i32, i32) {
    %c0_i32 = arith.constant 0 : i32
    %c0_i32_0 = arith.constant 0 : i32
    %c0_i32_1 = arith.constant 0 : i32
    %c0_i32_2 = arith.constant 0 : i32
    return %c0_i32, %c0_i32_0, %c0_i32_1 : i32, i32, i32
  }
  func.func @transform_3(%arg0: i32, %arg1: i32) -> (i32, i32, i32) {
    %c0_i32 = arith.constant 0 : i32
    %c0_i32_0 = arith.constant 0 : i32
    %c0_i32_1 = arith.constant 0 : i32
    %c0_i32_2 = arith.constant 0 : i32
    return %c0_i32, %c0_i32_0, %c0_i32_1 : i32, i32, i32
  }
  func.func @transform_4(%arg0: i32, %arg1: i32) -> (i32, i32) {
    %c0_i32 = arith.constant 0 : i32
    return %arg0, %arg1 : i32, i32
  }
}

</mosaic_0001>

<llo_original>
// kernel: conv_bn_relu_pallas.1
$region0: #{conv_bn_relu_pallas.1}
  #allocation0 [shape = 'u32[]', space=smem, size = 0x4, offset = 0x4, fixed_abs, tag = 'smem constant byte address 0x4 - core index']
  #allocation1 [shape = 'u32[72,128]{1,0:T(1,128)}', space=vmem, size = 0x9000, scoped, tag = 'internal scratch']
  %s0 = inlined_call_operand.vmem [shape: bf16[32,128], index: 0, kind: input, shape index: {}]
  %s1 = inlined_call_operand.vmem [shape: bf16[1,128,128], index: 1, kind: input, shape index: {}]
  %s2 = inlined_call_operand.vmem [shape: f32[1,1,128], index: 2, kind: input, shape index: {}]
  %s3 = inlined_call_operand.vmem [shape: f32[1,1,128], index: 3, kind: input, shape index: {}]
  %s4 = inlined_call_operand.vmem [shape: bf16[32,128], index: 4, kind: output, shape index: {}]
  %s5 = sld [smem:[#allocation0]]
  $region26: #{conv_bn_relu_pallas.1} parent=0
    _
  %s7 = ssub.s32 1, %s5
  %s8 = scalar_select 0, %s7, %s5
  // Predicated region
  $region2: #{conv_bn_relu_pallas.1} parent=0 // pred_check
    _
  $region3: #{conv_bn_relu_pallas.1} parent=0 // pred_check_branch
    %10 = sbr.rel (0) target = $region5
  $region4: #{conv_bn_relu_pallas.1} parent=0 // pred_region
    _
  $region5: #{conv_bn_relu_pallas.1} parent=0 // pred_fallthru
    _
  // Predicated region
  $region6: #{conv_bn_relu_pallas.1} parent=0 // pred_check
    _
  $region7: #{conv_bn_relu_pallas.1} parent=0 // pred_check_branch
    %12 = sbr.rel (0) target = $region9
  $region8: #{conv_bn_relu_pallas.1} parent=0 // pred_region
    _
  $region9: #{conv_bn_relu_pallas.1} parent=0 // pred_fallthru
    _
  // Predicated region
  $region10: #{conv_bn_relu_pallas.1} parent=0 // pred_check
    _
  $region11: #{conv_bn_relu_pallas.1} parent=0 // pred_check_branch
    %14 = sbr.rel (0) target = $region13
  $region12: #{conv_bn_relu_pallas.1} parent=0 // pred_region
    _
  $region13: #{conv_bn_relu_pallas.1} parent=0 // pred_fallthru
    _
  // Predicated region
  $region14: #{conv_bn_relu_pallas.1} parent=0 // pred_check
    _
  $region15: #{conv_bn_relu_pallas.1} parent=0 // pred_check_branch
    %16 = sbr.rel (0) target = $region17
  $region16: #{conv_bn_relu_pallas.1} parent=0 // pred_region
    _
  $region17: #{conv_bn_relu_pallas.1} parent=0 // pred_fallthru
    _
  %s17 = smul.u32 0, 16
  %s18 = smul.addr %s17, 4
  %s19 = scalar_lea.vmem %s1, %s18
  %v20 = vld [vmem:[%s19] sm:$0xf]
  %v21 = vld [vmem:[%s19 + $0x4] sm:$0xf]
  %v22 = vld [vmem:[%s19 + $0x8] sm:$0xf]
  %v23 = vld [vmem:[%s19 + $0xc] sm:$0xf]
  %v24 = vld [vmem:[%s19 + $0x10] sm:$0xf]
  %v25 = vld [vmem:[%s19 + $0x14] sm:$0xf]
  %v26 = vld [vmem:[%s19 + $0x18] sm:$0xf]
  %v27 = vld [vmem:[%s19 + $0x1c] sm:$0xf]
  %v28 = vld [vmem:[%s19 + $0x20] sm:$0xf]
  %v29 = vld [vmem:[%s19 + $0x24] sm:$0xf]
  %v30 = vld [vmem:[%s19 + $0x28] sm:$0xf]
  %v31 = vld [vmem:[%s19 + $0x2c] sm:$0xf]
  %v32 = vld [vmem:[%s19 + $0x30] sm:$0xf]
  %v33 = vld [vmem:[%s19 + $0x34] sm:$0xf]
  %v34 = vld [vmem:[%s19 + $0x38] sm:$0xf]
  %v35 = vld [vmem:[%s19 + $0x3c] sm:$0xf]
  %v36 = vld [vmem:[%s2] sm:$0x1]
  %v37 = vld [vmem:[%s3] sm:$0x1]
  %v38 = vld [vmem:[%s0] sm:$0xf]
  %v39 = vld [vmem:[%s0 + $0x4] sm:$0xf]
  %v40 = vld [vmem:[%s0 + $0x8] sm:$0xf]
  %v41 = vld [vmem:[%s0 + $0xc] sm:$0xf]
  %v46 = vunpack.c.l.b16 %v38
  %v47 = vunpack.c.l.b16 %v39
  %v48 = vunpack.c.l.b16 %v40
  %v49 = vunpack.c.l.b16 %v41
  %v50 = vpack.c.b16 %v47, %v46
  %v51 = vpack.c.b16 %v49, %v48
  %v70 = vunpack.c.l.b16 %v20
  %v71 = vunpack.c.l.b16 %v21
  %v72 = vunpack.c.l.b16 %v22
  %v73 = vunpack.c.l.b16 %v23
  %v74 = vunpack.c.l.b16 %v24
  %v75 = vunpack.c.l.b16 %v25
  %v76 = vunpack.c.l.b16 %v26
  %v77 = vunpack.c.l.b16 %v27
  %v78 = vunpack.c.l.b16 %v28
  %v79 = vunpack.c.l.b16 %v29
  %v80 = vunpack.c.l.b16 %v30
  %v81 = vunpack.c.l.b16 %v31
  %v82 = vunpack.c.l.b16 %v32
  %v83 = vunpack.c.l.b16 %v33
  %v84 = vunpack.c.l.b16 %v34
  %v85 = vunpack.c.l.b16 %v35
  %v86 = vpack.c.b16 %v71, %v70
  %v87 = vpack.c.b16 %v73, %v72
  %v88 = vpack.c.b16 %v75, %v74
  %v89 = vpack.c.b16 %v77, %v76
  %v90 = vpack.c.b16 %v79, %v78
  %v91 = vpack.c.b16 %v81, %v80
  %v92 = vpack.c.b16 %v83, %v82
  %v93 = vpack.c.b16 %v85, %v84
  %102 = vmatpush.bf16.msra.mxu0 %v93
  %103 = vmatpush.bf16.msra.mxu0 %v92
  %104 = vmatpush.bf16.msra.mxu0 %v91
  %105 = vmatpush.bf16.msra.mxu0 %v90
  %106 = vmatpush.bf16.msra.mxu0 %v89
  %107 = vmatpush.bf16.msra.mxu0 %v88
  %108 = vmatpush.bf16.msra.mxu0 %v87
  %109 = vmatpush.bf16.msra.mxu0 %v86
  %110 = vmatmul.bf16.gmra.mxu0 %v50
  %v111 = vpop.f32.mrf.mxu0
  %v112 = vadd.f32 0.0, %v111
  %v113 = vpop.f32.mrf.mxu0
  %v114 = vadd.f32 0.0, %v113
  %115 = vmatmul.bf16.gmra.mxu0 %v51
  %v116 = vpop.f32.mrf.mxu0
  %v117 = vadd.f32 0.0, %v116
  %v118 = vpop.f32.mrf.mxu0
  %v119 = vadd.f32 0.0, %v118
  %120 = vdwg.mxu0
  %v122 = vperm.slane %v36, 0
  %v124 = vmul.f32 %v112, %v122
  %v125 = vmul.f32 %v114, %v122
  %v126 = vmul.f32 %v117, %v122
  %v127 = vmul.f32 %v119, %v122
  %v129 = vperm.slane %v37, 0
  %v131 = vadd.f32 %v124, %v129
  %v132 = vadd.f32 %v125, %v129
  %v133 = vadd.f32 %v126, %v129
  %v134 = vadd.f32 %v127, %v129
  %v135 = vmax.f32 %v131, 0.0
  %v136 = vmax.f32 %v132, 0.0
  %v137 = vmax.f32 %v133, 0.0
  %v138 = vmax.f32 %v134, 0.0
  %v139 = vpack.c.bf16 %v135, %v135
  %v140 = vpack.c.bf16 %v136, %v136
  %v141 = vpack.c.bf16 %v137, %v137
  %v142 = vpack.c.bf16 %v138, %v138
  %143 = vst [vmem:[%s4] sm:$0xf] %v139
  %144 = vst [vmem:[%s4 + $0x4] sm:$0xf] %v140
  %145 = vst [vmem:[%s4 + $0x8] sm:$0xf] %v141
  %146 = vst [vmem:[%s4 + $0xc] sm:$0xf] %v142
  // Predicated region
  $region18: #{conv_bn_relu_pallas.1} parent=0 // pred_check
    _
  $region19: #{conv_bn_relu_pallas.1} parent=0 // pred_check_branch
    %148 = sbr.rel (0) target = $region21
  $region20: #{conv_bn_relu_pallas.1} parent=0 // pred_region
    _
  $region21: #{conv_bn_relu_pallas.1} parent=0 // pred_fallthru
    _
  // Predicated region
  $region22: #{conv_bn_relu_pallas.1} parent=0 // pred_check
    _
  $region23: #{conv_bn_relu_pallas.1} parent=0 // pred_check_branch
    %150 = sbr.rel (0) target = $region25
  $region24: #{conv_bn_relu_pallas.1} parent=0 // pred_region
    _
  $region25: #{conv_bn_relu_pallas.1} parent=0 // pred_fallthru
    _

</llo_original>
